<compile_context>
chip_gen: v6e
topology: v6e:2x2x1
jax: 0.10.0
libtpu: 0.0.40
codegen_flags: <defaults>
</compile_context>

<pallas_src>
import functools

import jax
import jax.numpy as jnp
from jax.experimental import pallas as pl
from jax.experimental.pallas import tpu as pltpu

EPS = 1e-5
MAX_BLOCK_B = 512          # per-step lane width cap (vreg headroom; see review)
IO_DTYPE = jnp.bfloat16    # activation I/O dtype; compute stays f32 in-kernel


def _elu(z):
    return jnp.where(z > 0, z, jnp.exp(jnp.minimum(z, 0.0)) - 1.0)


def _bn_scale_bias(bn, conv_bias):
    """Fold conv bias + eval-mode BatchNorm into per-channel scale/bias."""
    s = bn["gamma"] / jnp.sqrt(bn["var"] + EPS)
    b = (conv_bias - bn["mean"]) * s + bn["beta"]
    return s, b


def _round_up(x, m):
    return (x + m - 1) // m * m


def fold_params(params, Cin, hidden, Cout, NT, K1pad, Hpad):
    """Fold everything into two matrices:

        z_all = A13ᵀ @ xT          (xT has a constant-1 row carrying the biases)
        out   = ELU(z_all[:hidden])                # t_conv + BN1 + ELU
        y     = ELU(A2ᵀ @ out + z_all[Hpad:])      # residual + grouped conv + BN2

    xT row index is t*Cin + ci; row K1 is the ones-row; remaining pad rows are 0.
    """
    assert Cout % hidden == 0, "grouped conv requires Cout % hidden == 0"
    K1 = NT * Cin
    group = jnp.arange(Cout) // (Cout // hidden)              # out-channel -> group

    # --- t_conv + BN1 -> A1 (K1, hidden), b1 (hidden,) ----------------------------
    s1, b1 = _bn_scale_bias(params["bn1"], params["cb_t"])
    A1 = (params["w_t"] * s1[None, None, :]).reshape(K1, hidden)

    # --- residual path: 1x1x1 conv + BNr, or identity ------------------------------
    if Cin != hidden:
        sr, br = _bn_scale_bias(params["bnr"], params["cb_r"])
        WrS = params["w_r"] * sr[None, :]                     # (Cin, hidden)
    else:
        WrS = jnp.eye(hidden, dtype=jnp.float32)              # res = x
        br = jnp.zeros((hidden,), jnp.float32)

    # --- grouped temporal conv + BN2 ------------------------------------------------
    s2, c0 = _bn_scale_bias(params["bn2"], params["cb_g"])
    wg_s = params["w_g"] * s2[:, None]                        # (Cout, NT)
    S2 = wg_s.sum(axis=1)                                     # (Cout,)

    # ELU'd t_conv path through the grouped conv: A2[h, o] = [h == group[o]] * S2[o]
    A2 = (jnp.arange(hidden)[:, None] == group[None, :]).astype(jnp.float32) * S2[None, :]

    # residual path through the grouped conv: A3[(t,ci), o] = wg_s[o,t] * WrS[ci, group[o]]
    WrS_g = WrS[:, group]                                     # (Cin, Cout)
    A3 = (wg_s.T[:, None, :] * WrS_g[None, :, :]).reshape(K1, Cout)
    c = c0 + br[group] * S2                                   # total output bias (Cout,)

    # Fold biases into the matmul via the constant-1 row at index K1 of xT.
    A1_ext = jnp.zeros((K1pad, hidden), jnp.float32).at[:K1].set(A1).at[K1].set(b1)
    A3_ext = jnp.zeros((K1pad, Cout), jnp.float32).at[:K1].set(A3).at[K1].set(c)

    # Stack so a single MXU matmul against xT feeds both paths (8-aligned slices).
    A13 = jnp.zeros((K1pad, Hpad + Cout), jnp.float32)
    A13 = A13.at[:, :hidden].set(A1_ext).at[:, Hpad:].set(A3_ext)

    return A13.T, A2.T                                        # (Hpad+Cout, K1pad), (Cout, hidden)


# --------------------------------- Pallas kernel ----------------------------------
def _merging_kernel(xT_ref, a13t_ref, a2t_ref, yT_ref, *, hidden, hpad):
    x = xT_ref[...].astype(jnp.float32)                       # (K1pad, BB), bf16 -> f32
    # Single MXU pass over x: rows [:hidden] = t_conv+BN1 pre-ELU,
    # rows [hpad:] = residual-through-grouped-conv + BN2 bias (all biases via ones-row).
    z_all = jnp.dot(a13t_ref[...], x, preferred_element_type=jnp.float32)
    out = _elu(z_all[:hidden])                                # (hidden, BB)
    z = jnp.dot(a2t_ref[...], out, preferred_element_type=jnp.float32) + z_all[hpad:]
    yT_ref[...] = _elu(z).astype(yT_ref.dtype)                # (Cout, BB), lane-dense store


def eegsym_temporal_merging_block(x, params, NT, hidden, Cout):
    """x: (N, Cin, D, H=NT, W) float32.  Returns (N, Cout, D, 1, W) float32."""
    N, Cin, D, H, W = x.shape
    assert H == NT, "Temporal merging block expects the time axis to equal NumTemperal"
    K1 = NT * Cin
    K1pad = _round_up(K1 + 1, 16)     # +1 for the ones (bias) row; 16 keeps bf16 tiles clean
    Hpad = _round_up(hidden, 8)
    B = N * D * W

    # Grid sizing: large lane-blocks (amortize ~0.35us/step, ~3x BW efficiency vs 128),
    # but force an even step count >= 2 so v7x megacore gets balanced work.
    nsteps = max(2, pl.cdiv(B, MAX_BLOCK_B))
    nsteps += nsteps % 2
    block_b = _round_up(pl.cdiv(B, nsteps), 128)
    bpad = nsteps * block_b

    a13t, a2t = fold_params(params, Cin, hidden, Cout, NT, K1pad, Hpad)

    # Layout: (N,Cin,D,H,W) -> (H,Cin,N,D,W) -> (K1,B); pad rows to K1pad with a
    # ones-row at index K1 (bias lane), pad B to bpad, cast to bf16 for I/O.
    # TODO(synk): producing x already in (K1,B) layout upstream would remove this
    # extra HBM round trip (the kernel itself reads/writes each element only once).
    xT = jnp.transpose(x, (3, 1, 0, 2, 4)).reshape(K1, B)
    xT = jnp.pad(xT, ((0, K1pad - K1), (0, bpad - B)))
    xT = xT.at[K1, :].set(1.0).astype(IO_DTYPE)

    kernel = functools.partial(_merging_kernel, hidden=hidden, hpad=Hpad)
    full2 = lambda i: (0, 0)
    yT = pl.pallas_call(
        kernel,
        out_shape=jax.ShapeDtypeStruct((Cout, bpad), jnp.float32),
        grid=(nsteps,),
        in_specs=[
            pl.BlockSpec((K1pad, block_b), lambda i: (0, i)),   # activations, lane-dense
            pl.BlockSpec((Hpad + Cout, K1pad), full2),          # stacked folded weights
            pl.BlockSpec((Cout, hidden), full2),                # folded grouped-conv (out path)
        ],
        out_specs=pl.BlockSpec((Cout, block_b), lambda i: (0, i)),  # lane-dense stores
        compiler_params=pltpu.CompilerParams(dimension_semantics=("parallel",)),
    )(xT, a13t, a2t)

    # back to NCDHW: (Cout, B) -> (N, Cout, D, 1, W)
    y = yT[:, :B].reshape(Cout, N, D, W).transpose(1, 0, 2, 3)
    return y[:, :, :, None, :]


# ----------------------- pure-JAX reference (faithful to PyTorch) ------------------
def reference_forward(x, params, NT, hidden, Cout):
    N, Cin, D, H, W = x.shape

    def bn(v, p, nd):
        sh = (1, -1) + (1,) * (nd - 2)
        s = p["gamma"] / jnp.sqrt(p["var"] + EPS)
        return (v - p["mean"].reshape(sh)) * s.reshape(sh) + p["beta"].reshape(sh)

    # res_block1: t_conv (pad 0, kernel (1,NT,1)) + BN1 + ELU  -> H collapses to 1
    conv1 = (jnp.einsum("ncdtw,tch->nhdw", x, params["w_t"])
             + params["cb_t"][None, :, None, None])
    out = _elu(bn(conv1, params["bn1"], 4))                   # (N, hidden, D, W)

    if Cin != hidden:
        convr = (jnp.einsum("ncdtw,ch->nhdtw", x, params["w_r"])
                 + params["cb_r"][None, :, None, None, None])
        res = bn(convr, params["bnr"], 5)                     # (N, hidden, D, NT, W)
    else:
        res = x
    o1 = out[:, :, :, None, :] + res                          # torch broadcast add

    # g_conv1: grouped (groups=hidden) temporal conv + BN2 + ELU
    group = jnp.arange(Cout) // (Cout // hidden)
    o1g = o1[:, group]                                        # (N, Cout, D, NT, W)
    z = (jnp.einsum("nodtw,ot->nodw", o1g, params["w_g"])
         + params["cb_g"][None, :, None, None])
    y = _elu(bn(z, params["bn2"], 4))                         # (N, Cout, D, W)
    return y[:, :, :, None, :]


# --------------------------------- parameter init ----------------------------------
def init_params(key, Cin, hidden, Cout, NT):
    ks = jax.random.split(key, 9)

    def nrm(k, shape, scale=0.2):
        return scale * jax.random.normal(k, shape, jnp.float32)

    def bn(k, C):
        ka, kb, kc, kd = jax.random.split(k, 4)
        return dict(gamma=jax.random.uniform(ka, (C,), jnp.float32, 0.8, 1.2),
                    beta=nrm(kb, (C,), 0.1),
                    mean=nrm(kc, (C,), 0.1),
                    var=jax.random.uniform(kd, (C,), jnp.float32, 0.5, 1.5))

    return {
        # torch Conv3d weight (hid,Cin,1,NT,1) stored as w_t[t,ci,h]
        "w_t": nrm(ks[0], (NT, Cin, hidden)), "cb_t": nrm(ks[1], (hidden,), 0.1),
        "bn1": bn(ks[2], hidden),
        # residual 1x1x1 conv (only used when Cin != hidden)
        "w_r": nrm(ks[3], (Cin, hidden)), "cb_r": nrm(ks[4], (hidden,), 0.1),
        "bnr": bn(ks[5], hidden),
        # grouped temporal conv: torch weight (Cout,1,1,NT,1) stored as w_g[o,t]
        "w_g": nrm(ks[6], (Cout, NT)), "cb_g": nrm(ks[7], (Cout,), 0.1),
        "bn2": bn(ks[8], Cout),
    }


if __name__ == "__main__":
    key = jax.random.PRNGKey(0)
    N, D, NT, W, Cout = 4, 5, 3, 16, 16

    # Exercise both residual branches: conv_res+bn_res (Cin != hidden) and identity.
    for Cin, hidden in [(4, 8), (8, 8)]:
        key, kx, kp = jax.random.split(key, 3)
        x = jax.random.normal(kx, (N, Cin, D, NT, W), jnp.float32)
        params = init_params(kp, Cin, hidden, Cout, NT)

        out = jax.block_until_ready(
            eegsym_temporal_merging_block(x, params, NT, hidden, Cout))
        ref = reference_forward(x, params, NT, hidden, Cout)

        assert out.shape == ref.shape == (N, Cout, D, 1, W), (out.shape, ref.shape)
        assert bool(jnp.allclose(out, ref, rtol=2e-2, atol=2e-2)), (
            float(jnp.max(jnp.abs(out - ref))))

    # TODO(synk): Dropout and training-mode BatchNorm (batch statistics) have no
    # in-kernel equivalent here; they are eval-mode folded into weights/biases.
    print("KERNEL_OK")
</pallas_src>

<mosaic_0001>
module attributes {stable_mosaic.version = 11 : i64} {
  func.func @_merging_kernel(%arg0: i32, %arg1: memref<16x256xbf16, #tpu.memory_space<vmem>>, %arg2: memref<24x16xf32, #tpu.memory_space<vmem>>, %arg3: memref<16x8xf32, #tpu.memory_space<vmem>>, %arg4: memref<16x256xf32, #tpu.memory_space<vmem>>) attributes {dimension_semantics = [#tpu.dimension_semantics<parallel>], iteration_bounds = array<i64: 2>, scalar_prefetch = 0 : i64, scratch_operands = 0 : i64, tpu.core_type = #tpu.core_type<tc>, window_params = [{transform_indices = @transform_0, window_bounds = array<i64: 16, 256>}, {pipeline_mode = #tpu.pipeline_mode<synchronous>, transform_indices = @transform_1, window_bounds = array<i64: 24, 16>}, {pipeline_mode = #tpu.pipeline_mode<synchronous>, transform_indices = @transform_2, window_bounds = array<i64: 16, 8>}, {transform_indices = @transform_3, window_bounds = array<i64: 16, 256>}]} {
    %c0 = arith.constant 0 : index
    %c0_0 = arith.constant 0 : index
    %0 = vector.load %arg1[%c0, %c0_0] : memref<16x256xbf16, #tpu.memory_space<vmem>>, vector<16x256xbf16>
    %1 = arith.extf %0 : vector<16x256xbf16> to vector<16x256xf32>
    %c0_1 = arith.constant 0 : index
    %c0_2 = arith.constant 0 : index
    %2 = vector.load %arg2[%c0_1, %c0_2] : memref<24x16xf32, #tpu.memory_space<vmem>>, vector<24x16xf32>
    %cst = arith.constant dense<0.000000e+00> : vector<24x256xf32>
    %3 = tpu.matmul %2, %1, %cst {dimension_numbers = #tpu.dot_dimension_numbers<[1], [0], [0], [1], [0, 0, 1, 1], [], []>} : vector<24x16xf32>, vector<16x256xf32>, vector<24x256xf32> -> vector<24x256xf32>
    %4 = vector.extract_strided_slice %3 {offsets = [0, 0], sizes = [8, 256], strides = [1, 1]} : vector<24x256xf32> to vector<8x256xf32>
    %cst_3 = arith.constant 0.000000e+00 : f32
    %5 = vector.broadcast %cst_3 : f32 to vector<8x256xf32>
    %6 = arith.cmpf ogt, %4, %5 : vector<8x256xf32>
    %cst_4 = arith.constant 0.000000e+00 : f32
    %7 = vector.broadcast %cst_4 : f32 to vector<8x256xf32>
    %8 = arith.minimumf %4, %7 : vector<8x256xf32>
    %9 = math.exp %8 : vector<8x256xf32>
    %cst_5 = arith.constant 1.000000e+00 : f32
    %10 = vector.broadcast %cst_5 : f32 to vector<8x256xf32>
    %11 = arith.subf %9, %10 : vector<8x256xf32>
    %12 = arith.select %6, %4, %11 : vector<8x256xi1>, vector<8x256xf32>
    %c0_6 = arith.constant 0 : index
    %c0_7 = arith.constant 0 : index
    %13 = vector.load %arg3[%c0_6, %c0_7] : memref<16x8xf32, #tpu.memory_space<vmem>>, vector<16x8xf32>
    %cst_8 = arith.constant dense<0.000000e+00> : vector<16x256xf32>
    %14 = tpu.matmul %13, %12, %cst_8 {dimension_numbers = #tpu.dot_dimension_numbers<[1], [0], [0], [1], [0, 0, 1, 1], [], []>} : vector<16x8xf32>, vector<8x256xf32>, vector<16x256xf32> -> vector<16x256xf32>
    %15 = vector.extract_strided_slice %3 {offsets = [8, 0], sizes = [16, 256], strides = [1, 1]} : vector<24x256xf32> to vector<16x256xf32>
    %16 = arith.addf %14, %15 : vector<16x256xf32>
    %cst_9 = arith.constant 0.000000e+00 : f32
    %17 = vector.broadcast %cst_9 : f32 to vector<16x256xf32>
    %18 = arith.cmpf ogt, %16, %17 : vector<16x256xf32>
    %cst_10 = arith.constant 0.000000e+00 : f32
    %19 = vector.broadcast %cst_10 : f32 to vector<16x256xf32>
    %20 = arith.minimumf %16, %19 : vector<16x256xf32>
    %21 = math.exp %20 : vector<16x256xf32>
    %cst_11 = arith.constant 1.000000e+00 : f32
    %22 = vector.broadcast %cst_11 : f32 to vector<16x256xf32>
    %23 = arith.subf %21, %22 : vector<16x256xf32>
    %24 = arith.select %18, %16, %23 : vector<16x256xi1>, vector<16x256xf32>
    %c0_12 = arith.constant 0 : index
    %c0_13 = arith.constant 0 : index
    %25 = vector.load %arg4[%c0_12, %c0_13] : memref<16x256xf32, #tpu.memory_space<vmem>>, vector<16x256xf32>
    tpu.vector_store %arg4[%c0_12, %c0_13], %24 {strides = array<i32>} : memref<16x256xf32, #tpu.memory_space<vmem>>, vector<16x256xf32>,
    return
  }
  func.func @transform_0(%arg0: i32) -> (i32, i32) {
    %c0_i32 = arith.constant 0 : i32
    %c0_i32_0 = arith.constant 0 : i32
    return %c0_i32, %arg0 : i32, i32
  }
  func.func @transform_1(%arg0: i32) -> (i32, i32) {
    %c0_i32 = arith.constant 0 : i32
    %c0_i32_0 = arith.constant 0 : i32
    %c0_i32_1 = arith.constant 0 : i32
    return %c0_i32, %c0_i32_0 : i32, i32
  }
  func.func @transform_2(%arg0: i32) -> (i32, i32) {
    %c0_i32 = arith.constant 0 : i32
    %c0_i32_0 = arith.constant 0 : i32
    %c0_i32_1 = arith.constant 0 : i32
    return %c0_i32, %c0_i32_0 : i32, i32
  }
  func.func @transform_3(%arg0: i32) -> (i32, i32) {
    %c0_i32 = arith.constant 0 : i32
    %c0_i32_0 = arith.constant 0 : i32
    return %c0_i32, %arg0 : i32, i32
  }
}

</mosaic_0001>

<llo_original>
// kernel: tpu_custom_call.1
$region0: #{tpu_custom_call.1}
  #allocation0 [shape = 'u32[]', space=smem, size = 0x4, offset = 0x4, fixed_abs, tag = 'smem constant byte address 0x4 - core index']
  #allocation1 [shape = 'u32[144,128]{1,0:T(1,128)}', space=vmem, size = 0x12000, scoped, tag = 'internal scratch']
  %s0 = inlined_call_operand.vmem [shape: bf16[16,512], index: 0, kind: input, shape index: {}]
  %s1 = inlined_call_operand.vmem [shape: f32[24,16], index: 1, kind: input, shape index: {}]
  %s2 = inlined_call_operand.vmem [shape: f32[16,8], index: 2, kind: input, shape index: {}]
  %s3 = inlined_call_operand.hbm [shape: f32[16,512], index: 3, kind: output, shape index: {}]
  %s4 = sld [smem:[#allocation0]]
  $region83: #{tpu_custom_call.1} parent=0
    _
  %s6 = ssub.s32 1, %s4
  %s7 = scalar_select 0, %s6, %s4
  $region1: #{tpu_custom_call.1} parent=0
    #allocation2 [shape = 'u8[16384]{0}', space=vmem, size = 0x4000, scoped, tag = 'input window, operand 0']
    #allocation3 [shape = 'u8[32768]{0}', space=vmem, size = 0x8000, scoped, tag = 'output window, operand 0']
    #allocation4 [shape = 's32[2]{0}', space=sflag, size = 0x8, scoped, tag = 'scoped memory for tpu_custom_call.1']
    %8 = vsyncpa [#allocation4], 0
    %s9 = scalar_lea.sflag [#allocation4], 1
    %10 = vsyncpa %s9, 0
    loop: start=0, step=1, limit=4
    $region2: #{tpu_custom_call.1} parent=1 // loop_pre_header
      _
    $region3: #{tpu_custom_call.1} parent=1 // loop_header
      %s12 = sphi 0, %s16
      %p13 = scmp.ge.s32.totalorder %s12, 4
      %s22 = sphi 0, %s24
      %s25 = sphi 0, %s22
      %s26 = sphi 0, %s25
      %s42 = sphi 0, %s26
      %s46 = sphi 0, %s46
      %s48 = sphi 0, %s46
      %s49 = sphi 0, %s48
      %s63 = sphi 0, %s49
      %s67 = sphi 0, %s67
      %s69 = sphi 0, %s67
      %s70 = sphi 0, %s69
      %s84 = sphi 0, %s70
      %s90 = sphi 0, %s92
      %s93 = sphi 0, %s90
      %s94 = sphi 0, %s93
      %s110 = sphi 0, %s94
    $region4: #{tpu_custom_call.1} parent=1 // loop_header_branch
      %15 = sbr.rel (%p13) target = $region8
    $region5: #{tpu_custom_call.1} parent=1 // loop_body
      %s17 = ssub.s32 %s12, 1
      %s18 = ssub.s32 %s12, 2
      %s19 = sadd.s32 %s12, 1
      %s20 = ssub.s32 %s12, %s19
      %p21 = scmp.eq.s32.totalorder %s20, 0
      %s23 = sadd.s32 %s22, 1
      %s24 = scalar_select %p21, %s22, %s23
      %p27 = pneg %p21
      %p28 = scmp.eq.s32.totalorder %s12, 1
      %p29 = por %p27, %p28
      %p30 = scmp.ne.s32.totalorder %s22, %s25
      %p31 = scmp.eq.s32.totalorder %s12, 0
      %p32 = por %p30, %p31
      %p33 = scmp.ne.s32.totalorder %s22, %s25
      %p34 = scmp.eq.s32.totalorder %s17, 1
      %p35 = por %p33, %p34
      %p36 = scmp.ne.s32.totalorder %s25, %s26
      %p37 = scmp.eq.s32.totalorder %s17, 0
      %p38 = por %p36, %p37
      %p39 = scmp.ne.s32.totalorder %s25, %s26
      %p40 = scmp.eq.s32.totalorder %s18, 1
      %p41 = por %p39, %p40
      %p43 = scmp.ne.s32.totalorder %s26, %s42
      %p44 = scmp.eq.s32.totalorder %s18, 0
      %p45 = por %p43, %p44
      %s47 = sadd.s32 %s46, 1
      %p50 = scmp.eq.s32.totalorder %s12, 1
      %p51 = scmp.ne.s32.totalorder %s46, %s48
      %p52 = scmp.eq.s32.totalorder %s12, 0
      %p53 = por %p51, %p52
      %p54 = scmp.ne.s32.totalorder %s46, %s48
      %p55 = scmp.eq.s32.totalorder %s17, 1
      %p56 = por %p54, %p55
      %p57 = scmp.ne.s32.totalorder %s48, %s49
      %p58 = scmp.eq.s32.totalorder %s17, 0
      %p59 = por %p57, %p58
      %p60 = scmp.ne.s32.totalorder %s48, %s49
      %p61 = scmp.eq.s32.totalorder %s18, 1
      %p62 = por %p60, %p61
      %p64 = scmp.ne.s32.totalorder %s49, %s63
      %p65 = scmp.eq.s32.totalorder %s18, 0
      %p66 = por %p64, %p65
      %s68 = sadd.s32 %s67, 1
      %p71 = scmp.eq.s32.totalorder %s12, 1
      %p72 = scmp.ne.s32.totalorder %s67, %s69
      %p73 = scmp.eq.s32.totalorder %s12, 0
      %p74 = por %p72, %p73
      %p75 = scmp.ne.s32.totalorder %s67, %s69
      %p76 = scmp.eq.s32.totalorder %s17, 1
      %p77 = por %p75, %p76
      %p78 = scmp.ne.s32.totalorder %s69, %s70
      %p79 = scmp.eq.s32.totalorder %s17, 0
      %p80 = por %p78, %p79
      %p81 = scmp.ne.s32.totalorder %s69, %s70
      %p82 = scmp.eq.s32.totalorder %s18, 1
      %p83 = por %p81, %p82
      %p85 = scmp.ne.s32.totalorder %s70, %s84
      %p86 = scmp.eq.s32.totalorder %s18, 0
      %p87 = por %p85, %p86
      %s88 = ssub.s32 %s12, %s19
      %p89 = scmp.eq.s32.totalorder %s88, 0
      %s91 = sadd.s32 %s90, 1
      %s92 = scalar_select %p89, %s90, %s91
      %p95 = pneg %p89
      %p96 = scmp.eq.s32.totalorder %s12, 1
      %p97 = por %p95, %p96
      %p98 = scmp.ne.s32.totalorder %s90, %s93
      %p99 = scmp.eq.s32.totalorder %s12, 0
      %p100 = por %p98, %p99
      %p101 = scmp.ne.s32.totalorder %s90, %s93
      %p102 = scmp.eq.s32.totalorder %s17, 1
      %p103 = por %p101, %p102
      %p104 = scmp.ne.s32.totalorder %s93, %s94
      %p105 = scmp.eq.s32.totalorder %s17, 0
      %p106 = por %p104, %p105
      %p107 = scmp.ne.s32.totalorder %s93, %s94
      %p108 = scmp.eq.s32.totalorder %s18, 1
      %p109 = por %p107, %p108
      %p111 = scmp.ne.s32.totalorder %s94, %s110
      %p112 = scmp.eq.s32.totalorder %s18, 0
      %p113 = por %p111, %p112
      %p114 = scmp.le.s32.totalorder 1, %s12
      %p115 = scmp.lt.s32.totalorder %s12, 3
      %p116 = pnand %p114, %p115
      %p117 = pneg %p116
      // Predicated region
      $region9: #{tpu_custom_call.1} parent=5 // pred_check
        _
      $region10: #{tpu_custom_call.1} parent=5 // pred_check_branch
        %119 = sbr.rel (%p116) target = $region12
      $region11: #{tpu_custom_call.1} parent=5 // pred_region
        %s120 = ssub.s32 %s12, 1
        // Predicated region
        $region13: #{tpu_custom_call.1} parent=11 // pred_check
          %p121 = pneg %p59
        $region14: #{tpu_custom_call.1} parent=11 // pred_check_branch
          %123 = sbr.rel (%p121) target = $region16
        $region15: #{tpu_custom_call.1} parent=11 // pred_region
          _
        $region16: #{tpu_custom_call.1} parent=11 // pred_fallthru
          _
        // Predicated region
        $region17: #{tpu_custom_call.1} parent=11 // pred_check
          %p124 = pneg %p80
        $region18: #{tpu_custom_call.1} parent=11 // pred_check_branch
          %126 = sbr.rel (%p124) target = $region20
        $region19: #{tpu_custom_call.1} parent=11 // pred_region
          _
        $region20: #{tpu_custom_call.1} parent=11 // pred_fallthru
          _
      $region12: #{tpu_custom_call.1} parent=5 // pred_fallthru
        _
      %p127 = scmp.lt.s32.totalorder %s12, 2
      // Predicated region
      $region21: #{tpu_custom_call.1} parent=5 // pred_check
        %p128 = pneg %p127
      $region22: #{tpu_custom_call.1} parent=5 // pred_check_branch
        %130 = sbr.rel (%p128) target = $region24
      $region23: #{tpu_custom_call.1} parent=5 // pred_region
        // Predicated region
        $region25: #{tpu_custom_call.1} parent=23 // pred_check
          %p131 = pneg %p32
        $region26: #{tpu_custom_call.1} parent=23 // pred_check_branch
          %133 = sbr.rel (%p131) target = $region28
        $region27: #{tpu_custom_call.1} parent=23 // pred_region
          %s134 = sand.u32 %s22, 1
          %s135 = sand.u32 %s22, 1
          %s136 = smul.addr %s135, 16
          %s137 = scalar_lea.vmem [#allocation2], %s136
          %s138 = smul.u32 2, %s12
          %s139 = smul.addr %s138, 4
          %s140 = scalar_lea.vmem %s0, %s139
          // Predicated region
          $region29: #{tpu_custom_call.1} parent=27 // pred_check
            _
          $region30: #{tpu_custom_call.1} parent=27 // pred_check_branch
            %142 = sbr.rel (0) target = $region32
          $region31: #{tpu_custom_call.1} parent=27 // pred_region
            // Predicated region
            $region33: #{tpu_custom_call.1} parent=31 // pred_check
              _
            $region34: #{tpu_custom_call.1} parent=31 // pred_check_branch
              %144 = sbr.rel (0) target = $region36
            $region35: #{tpu_custom_call.1} parent=31 // pred_region
              // Predicated region
              $region48: #{tpu_custom_call.1} parent=35 // pred_check
                _
              $region49: #{tpu_custom_call.1} parent=35 // pred_check_branch
                %162 = sbr.rel (0) target = $region51
              $region50: #{tpu_custom_call.1} parent=35 // pred_region
                loop: start=0, step=1, limit=1
                $region52: #{tpu_custom_call.1} parent=50 // loop_pre_header
                  _
                $region53: #{tpu_custom_call.1} parent=50 // loop_header
                  %s164 = sphi 0, %s168
                  %p165 = scmp.ge.s32.totalorder %s164, 1
                  %s169 = sphi %s140, %s140
                  %s170 = sphi %s137, %s137
                $region54: #{tpu_custom_call.1} parent=50 // loop_header_branch
                  %167 = sbr.rel (%p165) target = $region58
                $region55: #{tpu_custom_call.1} parent=50 // loop_body
                  %v171 = vld [vmem:[%s169] sm:$0xff]
                  %172 = vst [vmem:[%s170] sm:$0xff] %v171
                  %v173 = vld [vmem:[%s169 + $0x10] sm:$0xff]
                  %174 = vst [vmem:[%s170 + $0x8] sm:$0xff] %v173
                $region56: #{tpu_custom_call.1} parent=50 // loop_footer
                  %s168 = sadd.s32 1, %s164
                $region57: #{tpu_custom_call.1} parent=50 // loop_footer_branch
                  %163 = sbr.rel target = $region53
                $region58: #{tpu_custom_call.1} parent=50 // loop_exit
                  _
              $region51: #{tpu_custom_call.1} parent=35 // pred_fallthru
                _
              // Predicated region
              $region59: #{tpu_custom_call.1} parent=35 // pred_check
                _
              $region60: #{tpu_custom_call.1} parent=35 // pred_check_branch
                %176 = sbr.rel target = $region62
              $region61: #{tpu_custom_call.1} parent=35 // pred_region
                _
              $region62: #{tpu_custom_call.1} parent=35 // pred_fallthru
                _
            $region36: #{tpu_custom_call.1} parent=31 // pred_fallthru
              _
            // Predicated region
            $region37: #{tpu_custom_call.1} parent=31 // pred_check
              _
            $region38: #{tpu_custom_call.1} parent=31 // pred_check_branch
              %146 = sbr.rel target = $region40
            $region39: #{tpu_custom_call.1} parent=31 // pred_region
              %s148 = ssub.s32 256, 1
              loop: start=0, step=1, limit=1
              $region41: #{tpu_custom_call.1} parent=39 // loop_pre_header
                _
              $region42: #{tpu_custom_call.1} parent=39 // loop_header
                %s150 = sphi 0, %s154
                %p151 = scmp.ge.s32.totalorder %s150, 1
                %s155 = sphi %s140, %s140
                %s156 = sphi %s137, %s137
              $region43: #{tpu_custom_call.1} parent=39 // loop_header_branch
                %153 = sbr.rel (%p151) target = $region47
              $region44: #{tpu_custom_call.1} parent=39 // loop_body
                %v157 = vld [vmem:[%s155] sm:%s148]
                %158 = vst [vmem:[%s156] sm:%s148] %v157
                %v159 = vld [vmem:[%s155 + $0x10] sm:%s148]
                %160 = vst [vmem:[%s156 + $0x8] sm:%s148] %v159
              $region45: #{tpu_custom_call.1} parent=39 // loop_footer
                %s154 = sadd.s32 1, %s150
              $region46: #{tpu_custom_call.1} parent=39 // loop_footer_branch
                %149 = sbr.rel target = $region42
              $region47: #{tpu_custom_call.1} parent=39 // loop_exit
                _
            $region40: #{tpu_custom_call.1} parent=31 // pred_fallthru
              _
          $region32: #{tpu_custom_call.1} parent=27 // pred_fallthru
            _
          %177 = vnop
        $region28: #{tpu_custom_call.1} parent=23 // pred_fallthru
          _
      $region24: #{tpu_custom_call.1} parent=5 // pred_fallthru
        _
      %p178 = scmp.le.s32.totalorder 1, %s12
      %p179 = scmp.lt.s32.totalorder %s12, 3
      %p180 = pnand %p178, %p179
      %p181 = pneg %p180
      // Predicated region
      $region63: #{tpu_custom_call.1} parent=5 // pred_check
        _
      $region64: #{tpu_custom_call.1} parent=5 // pred_check_branch
        %183 = sbr.rel (%p180) target = $region66
      $region65: #{tpu_custom_call.1} parent=5 // pred_region
        %s184 = ssub.s32 %s12, 1
        %s185 = sand.u32 %s25, 1
        %s186 = sand.u32 %s25, 1
        %s187 = smul.addr %s186, 16
        %s188 = scalar_lea.vmem [#allocation2], %s187
        // Predicated region
        $region67: #{tpu_custom_call.1} parent=65 // pred_check
          %p189 = pneg %p38
        $region68: #{tpu_custom_call.1} parent=65 // pred_check_branch
          %191 = sbr.rel (%p189) target = $region70
        $region69: #{tpu_custom_call.1} parent=65 // pred_region
          _
        $region70: #{tpu_custom_call.1} parent=65 // pred_fallthru
          _
        %s192 = sand.u32 %s25, 1
        %s193 = sand.u32 %s25, 1
        %s194 = smul.addr %s193, 16
        %s195 = scalar_lea.vmem [#allocation2], %s194
        %p196 = pneg %p38
        %p197 = pneg %p35
        %p198 = pneg %p59
        %p199 = pneg %p56
        %p200 = pneg %p80
        %p201 = pneg %p77
        %p202 = pneg %p106
        %p203 = pneg %p103
        %s204 = sand.u32 %s93, 1
        %s205 = scalar_lea.sflag [#allocation4], %s204
        %s206 = sand.u32 %s93, 1
        %s207 = smul.addr %s206, 32
        %s208 = scalar_lea.vmem [#allocation3], %s207
        %s209 = smul.u32 2, %s17
        %s210 = smul.u32 2, %s17
        %v211 = vld [vmem:[%s188] sm:$0xff]
        %v212 = vld [vmem:[%s188 + $0x8] sm:$0xff]
        %v213 = vunpack.c.l.bf16 %v211
        %v214 = vunpack.c.h.bf16 %v211
        %v215 = vunpack.c.l.bf16 %v212
        %v216 = vunpack.c.h.bf16 %v212
        %v217 = vld [vmem:[%s1] sm:$0xff]
        %v218 = vld [vmem:[%s1 + $0x8] sm:$0xff]
        %v219 = vld [vmem:[%s1 + $0x10] sm:$0xff]
        %vm220 = vcmask 130048
        %v222 = vsel %vm220, %v217, 0
        %v225 = vsel %vm220, %v218, 0
        %v228 = vsel %vm220, %v219, 0
        %230 = vmatprep.subr.mxu0 0.0
        %231 = vmatpush1.msra.mxu0 0.0
        %232 = vmatprep.subr.mxu0 0.0
        %233 = vmatpush1.msra.mxu0 0.0
        %234 = vmatprep.subr.mxu0 0.0
        %235 = vmatpush1.msra.mxu0 0.0
        %236 = vmatprep.subr.mxu0 0.0
        %237 = vmatpush1.msra.mxu0 0.0
        %238 = vmatprep.subr.mxu0 0.0
        %239 = vmatpush1.msra.mxu0 0.0
        %240 = vmatprep.subr.mxu0 0.0
        %241 = vmatpush1.msra.mxu0 0.0
        %242 = vmatprep.subr.mxu0 0.0
        %243 = vmatpush1.msra.mxu0 0.0
        %244 = vmatprep.subr.mxu0 0.0
        %245 = vmatpush1.msra.mxu0 0.0
        %246 = vmatprep.subr.mxu0 0.0
        %247 = vmatpush1.msra.mxu0 0.0
        %248 = vmatprep.subr.mxu0 0.0
        %249 = vmatpush1.msra.mxu0 0.0
        %250 = vmatprep.subr.mxu0 0.0
        %251 = vmatpush1.msra.mxu0 0.0
        %252 = vmatprep.subr.mxu0 0.0
        %253 = vmatpush1.msra.mxu0 0.0
        %254 = vmatprep.subr.mxu0 0.0
        %255 = vmatpush1.msra.mxu0 0.0
        %256 = vmatprep.subr.mxu0 0.0
        %257 = vmatpush1.msra.mxu0 0.0
        %258 = vmatprep.subr.mxu0 %v216
        %259 = vmatpush1.msra.mxu0 %v215
        %260 = vmatprep.subr.mxu0 %v214
        %261 = vmatpush1.msra.mxu0 %v213
        %262 = vmatprep.subr.mxu0 0.0
        %263 = vmatpush2.msra.mxu0 0.0
        %264 = vmatprep.subr.mxu0 0.0
        %265 = vmatpush2.msra.mxu0 0.0
        %266 = vmatprep.subr.mxu0 0.0
        %267 = vmatpush2.msra.mxu0 0.0
        %268 = vmatprep.subr.mxu0 0.0
        %269 = vmatpush2.msra.mxu0 0.0
        %270 = vmatprep.subr.mxu0 0.0
        %271 = vmatpush2.msra.mxu0 0.0
        %272 = vmatprep.subr.mxu0 0.0
        %273 = vmatpush2.msra.mxu0 0.0
        %274 = vmatprep.subr.mxu0 0.0
        %275 = vmatpush2.msra.mxu0 0.0
        %276 = vmatprep.subr.mxu0 0.0
        %277 = vmatpush2.msra.mxu0 0.0
        %278 = vmatprep.subr.mxu0 0.0
        %279 = vmatpush2.msra.mxu0 0.0
        %280 = vmatprep.subr.mxu0 0.0
        %281 = vmatpush2.msra.mxu0 0.0
        %282 = vmatprep.subr.mxu0 0.0
        %283 = vmatpush2.msra.mxu0 0.0
        %284 = vmatprep.subr.mxu0 0.0
        %285 = vmatpush2.msra.mxu0 0.0
        %286 = vmatprep.subr.mxu0 0.0
        %287 = vmatpush2.msra.mxu0 0.0
        %288 = vmatprep.subr.mxu0 0.0
        %289 = vmatpush2.msra.mxu0 0.0
        %290 = vmatprep.subr.mxu0 0.0
        %291 = vmatpush2.msra.mxu0 0.0
        %292 = vmatprep.subr.mxu0 0.0
        %293 = vmatpush2.msra.mxu0 0.0
        %294 = vmatprep.mubr.f32.mxu0 0.0
        %295 = vmatmul.mubr.f32.gmra.mxu0 %v222
        %v296 = vpop.f32.mrf.mxu0
        %v297 = vadd.f32 0.0, %v296
        %v298 = vpop.f32.mrf.mxu0
        %v299 = vadd.f32 0.0, %v298
        %300 = vmatprep.mubr.f32.mxu0 0.0
        %301 = vmatmul.mubr.f32.gmra.mxu0 %v225
        %v302 = vpop.f32.mrf.mxu0
        %v303 = vadd.f32 0.0, %v302
        %v304 = vpop.f32.mrf.mxu0
        %v305 = vadd.f32 0.0, %v304
        %306 = vmatprep.mubr.f32.mxu0 0.0
        %307 = vmatmul.mubr.f32.gmra.mxu0 %v228
        %v308 = vpop.f32.mrf.mxu0
        %v309 = vadd.f32 0.0, %v308
        %v310 = vpop.f32.mrf.mxu0
        %v311 = vadd.f32 0.0, %v310
        %312 = vdwg.mxu0
        %vm313 = vcmp.gt.f32.partialorder %v297, 0.0
        %vm314 = vcmp.gt.f32.partialorder %v299, 0.0
        %v315 = vmin.f32 %v297, 0.0
        %v316 = vmin.f32 %v299, 0.0
        %v317 = vmul.f32 %v315, 1.442695
        %v318 = vpow.pop %v317
        %v319 = vmul.f32 %v316, 1.442695
        %v320 = vpow.pop %v319
        %v321 = vsub.f32 %v318, 1.0
        %v322 = vsub.f32 %v320, 1.0
        %v323 = vsel %vm313, %v297, %v321
        %v324 = vsel %vm314, %v299, %v322
        %v325 = vld [vmem:[%s2] sm:$0xff]
        %v326 = vld [vmem:[%s2 + $0x8] sm:$0xff]
        %vm327 = vcmask 64512
        %v329 = vsel %vm327, %v325, 0
        %v332 = vsel %vm327, %v326, 0
        %334 = vmatprep.subr.mxu0 0.0
        %335 = vmatpush1.msra.mxu0 0.0
        %336 = vmatprep.subr.mxu0 0.0
        %337 = vmatpush1.msra.mxu0 0.0
        %338 = vmatprep.subr.mxu0 0.0
        %339 = vmatpush1.msra.mxu0 0.0
        %340 = vmatprep.subr.mxu0 0.0
        %341 = vmatpush1.msra.mxu0 0.0
        %342 = vmatprep.subr.mxu0 0.0
        %343 = vmatpush1.msra.mxu0 0.0
        %344 = vmatprep.subr.mxu0 0.0
        %345 = vmatpush1.msra.mxu0 0.0
        %346 = vmatprep.subr.mxu0 0.0
        %347 = vmatpush1.msra.mxu0 0.0
        %348 = vmatprep.subr.mxu0 0.0
        %349 = vmatpush1.msra.mxu0 0.0
        %350 = vmatprep.subr.mxu0 0.0
        %351 = vmatpush1.msra.mxu0 0.0
        %352 = vmatprep.subr.mxu0 0.0
        %353 = vmatpush1.msra.mxu0 0.0
        %354 = vmatprep.subr.mxu0 0.0
        %355 = vmatpush1.msra.mxu0 0.0
        %356 = vmatprep.subr.mxu0 0.0
        %357 = vmatpush1.msra.mxu0 0.0
        %358 = vmatprep.subr.mxu0 0.0
        %359 = vmatpush1.msra.mxu0 0.0
        %360 = vmatprep.subr.mxu0 0.0
        %361 = vmatpush1.msra.mxu0 0.0
        %362 = vmatprep.subr.mxu0 0.0
        %363 = vmatpush1.msra.mxu0 0.0
        %364 = vmatprep.subr.mxu0 %v324
        %365 = vmatpush1.msra.mxu0 %v323
        %366 = vmatprep.subr.mxu0 0.0
        %367 = vmatpush2.msra.mxu0 0.0
        %368 = vmatprep.subr.mxu0 0.0
        %369 = vmatpush2.msra.mxu0 0.0
        %370 = vmatprep.subr.mxu0 0.0
        %371 = vmatpush2.msra.mxu0 0.0
        %372 = vmatprep.subr.mxu0 0.0
        %373 = vmatpush2.msra.mxu0 0.0
        %374 = vmatprep.subr.mxu0 0.0
        %375 = vmatpush2.msra.mxu0 0.0
        %376 = vmatprep.subr.mxu0 0.0
        %377 = vmatpush2.msra.mxu0 0.0
        %378 = vmatprep.subr.mxu0 0.0
        %379 = vmatpush2.msra.mxu0 0.0
        %380 = vmatprep.subr.mxu0 0.0
        %381 = vmatpush2.msra.mxu0 0.0
        %382 = vmatprep.subr.mxu0 0.0
        %383 = vmatpush2.msra.mxu0 0.0
        %384 = vmatprep.subr.mxu0 0.0
        %385 = vmatpush2.msra.mxu0 0.0
        %386 = vmatprep.subr.mxu0 0.0
        %387 = vmatpush2.msra.mxu0 0.0
        %388 = vmatprep.subr.mxu0 0.0
        %389 = vmatpush2.msra.mxu0 0.0
        %390 = vmatprep.subr.mxu0 0.0
        %391 = vmatpush2.msra.mxu0 0.0
        %392 = vmatprep.subr.mxu0 0.0
        %393 = vmatpush2.msra.mxu0 0.0
        %394 = vmatprep.subr.mxu0 0.0
        %395 = vmatpush2.msra.mxu0 0.0
        %396 = vmatprep.subr.mxu0 0.0
        %397 = vmatpush2.msra.mxu0 0.0
        %398 = vmatprep.mubr.f32.mxu0 0.0
        %399 = vmatmul.mubr.f32.gmra.mxu0 %v329
        %v400 = vpop.f32.mrf.mxu0
        %v401 = vadd.f32 %v303, %v400
        %v402 = vpop.f32.mrf.mxu0
        %v403 = vadd.f32 %v305, %v402
        %404 = vmatprep.mubr.f32.mxu0 0.0
        %405 = vmatmul.mubr.f32.gmra.mxu0 %v332
        %v406 = vpop.f32.mrf.mxu0
        %v407 = vadd.f32 %v309, %v406
        %v408 = vpop.f32.mrf.mxu0
        %v409 = vadd.f32 %v311, %v408
        %410 = vdwg.mxu0
        %vm411 = vcmp.gt.f32.partialorder %v401, 0.0
        %vm412 = vcmp.gt.f32.partialorder %v403, 0.0
        %vm413 = vcmp.gt.f32.partialorder %v407, 0.0
        %vm414 = vcmp.gt.f32.partialorder %v409, 0.0
        %v415 = vmin.f32 %v401, 0.0
        %v416 = vmin.f32 %v403, 0.0
        %v417 = vmin.f32 %v407, 0.0
        %v418 = vmin.f32 %v409, 0.0
        %v419 = vmul.f32 %v415, 1.442695
        %v420 = vpow.pop %v419
        %v421 = vmul.f32 %v416, 1.442695
        %v422 = vpow.pop %v421
        %v423 = vmul.f32 %v417, 1.442695
        %v424 = vpow.pop %v423
        %v425 = vmul.f32 %v418, 1.442695
        %v426 = vpow.pop %v425
        %v427 = vsub.f32 %v420, 1.0
        %v428 = vsub.f32 %v422, 1.0
        %v429 = vsub.f32 %v424, 1.0
        %v430 = vsub.f32 %v426, 1.0
        %v431 = vsel %vm411, %v401, %v427
        %v432 = vsel %vm412, %v403, %v428
        %v433 = vsel %vm413, %v407, %v429
        %v434 = vsel %vm414, %v409, %v430
        %435 = vst [vmem:[%s208] sm:$0xff] %v431
        %436 = vst [vmem:[%s208 + $0x8] sm:$0xff] %v432
        %437 = vst [vmem:[%s208 + $0x10] sm:$0xff] %v433
        %438 = vst [vmem:[%s208 + $0x18] sm:$0xff] %v434
        %s439 = sand.u32 %s93, 1
        %s440 = scalar_lea.sflag [#allocation4], %s439
        %s441 = sand.u32 %s93, 1
        %s442 = smul.addr %s441, 32
        %s443 = scalar_lea.vmem [#allocation3], %s442
        // Predicated region
        $region71: #{tpu_custom_call.1} parent=65 // pred_check
          %p444 = pneg %p103
        $region72: #{tpu_custom_call.1} parent=65 // pred_check_branch
          %446 = sbr.rel (%p444) target = $region74
        $region73: #{tpu_custom_call.1} parent=65 // pred_region
          %s447 = smul.u32 2, %s17
          %s449 = ssub.s32 512, 512
          %450 = vsyncadd %s440, %s449
          %s451 = smul.addr %s447, 128
          %s452 = scalar_lea.hbm %s3, %s451
          %s453 = sshll.u32 %s443, 4
          %s454 = int_to_ptr.vmem [resolvable:$true] %s453
          %459 = dma.vmem_to_hbm [thread:$0]  %s454, 512, %s452, %s440, 256, 512, 16
        $region74: #{tpu_custom_call.1} parent=65 // pred_fallthru
          _
      $region66: #{tpu_custom_call.1} parent=5 // pred_fallthru
        _
      %p460 = scmp.le.s32.totalorder 2, %s12
      // Predicated region
      $region75: #{tpu_custom_call.1} parent=5 // pred_check
        %p461 = pneg %p460
      $region76: #{tpu_custom_call.1} parent=5 // pred_check_branch
        %463 = sbr.rel (%p461) target = $region78
      $region77: #{tpu_custom_call.1} parent=5 // pred_region
        %s464 = ssub.s32 %s12, 2
        // Predicated region
        $region79: #{tpu_custom_call.1} parent=77 // pred_check
          %p465 = pneg %p109
        $region80: #{tpu_custom_call.1} parent=77 // pred_check_branch
          %467 = sbr.rel (%p465) target = $region82
        $region81: #{tpu_custom_call.1} parent=77 // pred_region
          %s468 = sand.u32 %s94, 1
          %s469 = scalar_lea.sflag [#allocation4], %s468
          %s470 = sand.u32 %s94, 1
          %s471 = smul.addr %s470, 32
          %s472 = scalar_lea.vmem [#allocation3], %s471
          %473 = dma.done %s469, 512
        $region82: #{tpu_custom_call.1} parent=77 // pred_fallthru
          _
      $region78: #{tpu_custom_call.1} parent=5 // pred_fallthru
        _
    $region6: #{tpu_custom_call.1} parent=1 // loop_footer
      %s16 = sadd.s32 1, %s12
    $region7: #{tpu_custom_call.1} parent=1 // loop_footer_branch
      %11 = sbr.rel target = $region3
    $region8: #{tpu_custom_call.1} parent=1 // loop_exit
      _
    %474 = vsyncpa [#allocation4], 1
    %s475 = scalar_lea.sflag [#allocation4], 1
    %476 = vsyncpa %s475, 1

</llo_original>
